<compile_context>
chip_gen: v7x
topology: tpu7x:2x2x1
jax: 0.10.0
libtpu: 0.0.40
codegen_flags: <defaults>
</compile_context>

<pallas_src>
import jax
import jax.numpy as jnp
from jax.experimental import pallas as pl
from jax.experimental.pallas import tpu as pltpu


def _round_up(v: int, m: int) -> int:
    return (v + m - 1) // m * m


# --------------------- pass 1: per-tile logits + running min/max -------------
def _logits_minmax_kernel(scale_ref, diff_ref, logits_ref, min_ref, max_ref):
    # scale_ref : SMEM (1,) f32            exp(clip(temperature, -5, 5))
    # diff_ref  : VMEM (D_pad, E_tile) f32 (x_i - x_j)^T tile, edges on lanes
    # logits_ref: VMEM (1, E_tile) f32     lane-dense logits tile
    # min_ref   : VMEM (1, 1) f32          running global min (resident)
    # max_ref   : VMEM (1, 1) f32          running global max (resident)
    d = diff_ref[...]
    dist = jnp.sum(d * d, axis=0, keepdims=True)          # (1, E_tile)
    logits = dist * scale_ref[0]                           # scalar broadcast
    logits_ref[...] = logits

    tile_min = jnp.min(logits, keepdims=True)              # (1, 1)
    tile_max = jnp.max(logits, keepdims=True)              # (1, 1)

    t = pl.program_id(0)

    @pl.when(t == 0)
    def _():
        min_ref[...] = tile_min
        max_ref[...] = tile_max

    @pl.when(t > 0)
    def _():
        min_ref[...] = jnp.minimum(min_ref[...], tile_min)
        max_ref[...] = jnp.maximum(max_ref[...], tile_max)


# --------------------- pass 2: global min-max normalization ------------------
def _normalize_kernel(min_ref, max_ref, logits_ref, out_ref):
    # min_ref/max_ref: VMEM (1,1) f32 ; logits_ref/out_ref: VMEM (1, E_tile) f32
    lmin = min_ref[...]
    lmax = max_ref[...]
    # Guard the degenerate all-equal case (pure reference would produce NaN).
    inv = 1.0 / jnp.maximum(lmax - lmin, jnp.float32(1e-30))
    out_ref[...] = 1.0 - (logits_ref[...] - lmin) * inv


# ------------------------------- wrapper --------------------------------------
def dem_forward(x, edge_index, temperature, *, e_tile=None):
    """x: (N, D) f32, edge_index: (2, E) int32, temperature: scalar f32 -> (E, 1)."""
    x = x.astype(jnp.float32)
    i = edge_index[0]
    j = edge_index[1]
    E = int(i.shape[0])
    D = int(x.shape[1])

    # Gather + diff + transpose are plain-JAX glue; the kernel sees one slab.
    diff_t = (jnp.take(x, i, axis=0) - jnp.take(x, j, axis=0)).T    # (D, E)

    d_pad = _round_up(D, 8)
    if e_tile is None:
        # Biggest lane tile (multiple of 128, <=2048) whose double-buffered
        # input stays comfortably inside the default scoped-VMEM limit.
        max_lanes = max(128, ((4 * 1024 * 1024) // (d_pad * 4)) // 128 * 128)
        e_tile = min(2048, max_lanes, _round_up(E, 128))
    e_pad = _round_up(E, e_tile)
    n_tiles = e_pad // e_tile

    # Zero-pad features (zero diff adds nothing to the squared sum); replicate
    # the last real edge along E so padding cannot perturb the global min/max.
    if d_pad > D:
        diff_t = jnp.pad(diff_t, ((0, d_pad - D), (0, 0)))
    if e_pad > E:
        diff_t = jnp.pad(diff_t, ((0, 0), (0, e_pad - E)), mode="edge")

    scale = jnp.exp(jnp.clip(jnp.asarray(temperature, jnp.float32), -5.0, 5.0))
    scale = jnp.reshape(scale, (1,))

    logits, lmin, lmax = pl.pallas_call(
        _logits_minmax_kernel,
        grid=(n_tiles,),
        in_specs=[
            pl.BlockSpec(memory_space=pltpu.MemorySpace.SMEM),       # scale
            pl.BlockSpec((d_pad, e_tile), lambda t: (0, t)),         # diff tile
        ],
        out_specs=[
            pl.BlockSpec((1, e_tile), lambda t: (0, t)),             # logits tile
            pl.BlockSpec((1, 1), lambda t: (0, 0)),                  # running min
            pl.BlockSpec((1, 1), lambda t: (0, 0)),                  # running max
        ],
        out_shape=[
            jax.ShapeDtypeStruct((1, e_pad), jnp.float32),
            jax.ShapeDtypeStruct((1, 1), jnp.float32),
            jax.ShapeDtypeStruct((1, 1), jnp.float32),
        ],
        compiler_params=pltpu.CompilerParams(
            dimension_semantics=("arbitrary",)),   # sequential min/max fold
    )(scale, diff_t)

    edge_w = pl.pallas_call(
        _normalize_kernel,
        grid=(n_tiles,),
        in_specs=[
            pl.BlockSpec((1, 1), lambda t: (0, 0)),                  # global min
            pl.BlockSpec((1, 1), lambda t: (0, 0)),                  # global max
            pl.BlockSpec((1, e_tile), lambda t: (0, t)),             # logits tile
        ],
        out_specs=pl.BlockSpec((1, e_tile), lambda t: (0, t)),
        out_shape=jax.ShapeDtypeStruct((1, e_pad), jnp.float32),
        compiler_params=pltpu.CompilerParams(
            dimension_semantics=("parallel",)),
    )(lmin, lmax, logits)

    # (1, E_pad) row slice -> (E, 1): same linear order, pure reshape.
    return edge_w[0, :E].reshape(E, 1)


def dem_forward_ref(x, edge_index, temperature):
    """Pure-JAX reference matching the PyTorch module."""
    i, j = edge_index[0], edge_index[1]
    x_i, x_j = x[i], x[j]
    dist = jnp.sum((x_i - x_j) ** 2, axis=-1)
    logits = dist * jnp.exp(jnp.clip(temperature, -5.0, 5.0))
    lmin, lmax = jnp.min(logits), jnp.max(logits)
    w = 1.0 - (logits - lmin) / (lmax - lmin)
    return w[:, None]


if __name__ == "__main__":
    key = jax.random.PRNGKey(0)
    k_x, k_i, k_j = jax.random.split(key, 3)

    N, D, E = 64, 32, 1000                      # nodes, feature dim, edges
    x = jax.random.normal(k_x, (N, D), dtype=jnp.float32)
    src = jax.random.randint(k_i, (E,), 0, N, dtype=jnp.int32)
    dst = jax.random.randint(k_j, (E,), 0, N, dtype=jnp.int32)
    edge_index = jnp.stack([src, dst], axis=0)  # (2, E)

    # Deterministic parameter init: distance == 'euclidean' -> temperature = 4.0
    temperature = jnp.float32(4.0)

    # e_tile=256 forces a 4-step edge grid (exercises padding + min/max fold).
    out = dem_forward(x, edge_index, temperature, e_tile=256)
    out = jax.block_until_ready(out)

    ref = dem_forward_ref(x, edge_index, temperature)
    assert out.shape == (E, 1)
    assert jnp.allclose(out, ref, rtol=1e-5, atol=1e-5), float(
        jnp.max(jnp.abs(out - ref)))

    print("KERNEL_OK")
</pallas_src>

<mosaic_0001>
module attributes {stable_mosaic.version = 11 : i64} {
  func.func @_logits_minmax_kernel(%arg0: i32, %arg1: memref<1xf32, #tpu.memory_space<smem>>, %arg2: memref<32x256xf32, #tpu.memory_space<vmem>>, %arg3: memref<1x256xf32, #tpu.memory_space<vmem>>, %arg4: memref<1x1xf32, #tpu.memory_space<vmem>>, %arg5: memref<1x1xf32, #tpu.memory_space<vmem>>) attributes {dimension_semantics = [#tpu.dimension_semantics<arbitrary>], iteration_bounds = array<i64: 4>, scalar_prefetch = 0 : i64, scratch_operands = 0 : i64, tpu.core_type = #tpu.core_type<tc>, window_params = [{transform_indices = @transform_0, window_bounds = array<i64: 1>}, {transform_indices = @transform_1, window_bounds = array<i64: 32, 256>}, {transform_indices = @transform_2, window_bounds = array<i64: 1, 256>}, {pipeline_mode = #tpu.pipeline_mode<synchronous>, transform_indices = @transform_3, window_bounds = array<i64: 1, 1>}, {pipeline_mode = #tpu.pipeline_mode<synchronous>, transform_indices = @transform_4, window_bounds = array<i64: 1, 1>}]} {
    %c0 = arith.constant 0 : index
    %c0_0 = arith.constant 0 : index
    %0 = vector.load %arg2[%c0, %c0_0] : memref<32x256xf32, #tpu.memory_space<vmem>>, vector<32x256xf32>
    %1 = arith.mulf %0, %0 : vector<32x256xf32>
    %cst = arith.constant dense<0.000000e+00> : vector<256xf32>
    %2 = vector.multi_reduction <add>, %1, %cst [0] : vector<32x256xf32> to vector<256xf32>
    %3 = vector.shape_cast %2 : vector<256xf32> to vector<1x256xf32>
    %c0_1 = arith.constant 0 : index
    %4 = memref.load %arg1[%c0_1] : memref<1xf32, #tpu.memory_space<smem>>
    %5 = vector.broadcast %4 : f32 to vector<1x256xf32>
    %6 = arith.mulf %3, %5 : vector<1x256xf32>
    %c0_2 = arith.constant 0 : index
    %c0_3 = arith.constant 0 : index
    %7 = vector.load %arg3[%c0_2, %c0_3] : memref<1x256xf32, #tpu.memory_space<vmem>>, vector<1x256xf32>
    tpu.vector_store %arg3[%c0_2, %c0_3], %6 {strides = array<i32>} : memref<1x256xf32, #tpu.memory_space<vmem>>, vector<1x256xf32>,
    %8 = vector.shape_cast %6 : vector<1x256xf32> to vector<1x1x256xf32>
    %cst_4 = arith.constant dense<0x7F800000> : vector<1xf32>
    %9 = vector.multi_reduction <minimumf>, %8, %cst_4 [1, 2] : vector<1x1x256xf32> to vector<1xf32>
    %10 = vector.shape_cast %9 : vector<1xf32> to vector<1x1x1xf32>
    %11 = vector.extract %10[0, 0, 0] : f32 from vector<1x1x1xf32>
    %12 = vector.broadcast %11 : f32 to vector<1x1xf32>
    %13 = vector.shape_cast %6 : vector<1x256xf32> to vector<1x1x256xf32>
    %cst_5 = arith.constant dense<0xFF800000> : vector<1xf32>
    %14 = vector.multi_reduction <maximumf>, %13, %cst_5 [1, 2] : vector<1x1x256xf32> to vector<1xf32>
    %15 = vector.shape_cast %14 : vector<1xf32> to vector<1x1x1xf32>
    %16 = vector.extract %15[0, 0, 0] : f32 from vector<1x1x1xf32>
    %17 = vector.broadcast %16 : f32 to vector<1x1xf32>
    %c0_i32 = arith.constant 0 : i32
    %18 = arith.cmpi eq, %arg0, %c0_i32 : i32
    %19 = arith.extui %18 : i1 to i32
    %c0_i32_6 = arith.constant 0 : i32
    %20 = arith.cmpi ne, %19, %c0_i32_6 : i32
    scf.if %20 {
      %c0_9 = arith.constant 0 : index
      %c0_10 = arith.constant 0 : index
      %24 = vector.load %arg4[%c0_9, %c0_10] : memref<1x1xf32, #tpu.memory_space<vmem>>, vector<1x1xf32>
      tpu.vector_store %arg4[%c0_9, %c0_10], %12 {strides = array<i32>} : memref<1x1xf32, #tpu.memory_space<vmem>>, vector<1x1xf32>,
      %c0_11 = arith.constant 0 : index
      %c0_12 = arith.constant 0 : index
      %25 = vector.load %arg5[%c0_11, %c0_12] : memref<1x1xf32, #tpu.memory_space<vmem>>, vector<1x1xf32>
      tpu.vector_store %arg5[%c0_11, %c0_12], %17 {strides = array<i32>} : memref<1x1xf32, #tpu.memory_space<vmem>>, vector<1x1xf32>,
    } else {
    }
    %c0_i32_7 = arith.constant 0 : i32
    %21 = arith.cmpi sgt, %arg0, %c0_i32_7 : i32
    %22 = arith.extui %21 : i1 to i32
    %c0_i32_8 = arith.constant 0 : i32
    %23 = arith.cmpi ne, %22, %c0_i32_8 : i32
    scf.if %23 {
      %c0_9 = arith.constant 0 : index
      %c0_10 = arith.constant 0 : index
      %24 = vector.load %arg4[%c0_9, %c0_10] : memref<1x1xf32, #tpu.memory_space<vmem>>, vector<1x1xf32>
      %25 = arith.minimumf %24, %12 : vector<1x1xf32>
      %c0_11 = arith.constant 0 : index
      %c0_12 = arith.constant 0 : index
      %26 = vector.load %arg4[%c0_11, %c0_12] : memref<1x1xf32, #tpu.memory_space<vmem>>, vector<1x1xf32>
      tpu.vector_store %arg4[%c0_11, %c0_12], %25 {strides = array<i32>} : memref<1x1xf32, #tpu.memory_space<vmem>>, vector<1x1xf32>,
      %c0_13 = arith.constant 0 : index
      %c0_14 = arith.constant 0 : index
      %27 = vector.load %arg5[%c0_13, %c0_14] : memref<1x1xf32, #tpu.memory_space<vmem>>, vector<1x1xf32>
      %28 = arith.maximumf %27, %17 : vector<1x1xf32>
      %c0_15 = arith.constant 0 : index
      %c0_16 = arith.constant 0 : index
      %29 = vector.load %arg5[%c0_15, %c0_16] : memref<1x1xf32, #tpu.memory_space<vmem>>, vector<1x1xf32>
      tpu.vector_store %arg5[%c0_15, %c0_16], %28 {strides = array<i32>} : memref<1x1xf32, #tpu.memory_space<vmem>>, vector<1x1xf32>,
    } else {
    }
    return
  }
  func.func @transform_0(%arg0: i32) -> i32 {
    %c0_i32 = arith.constant 0 : i32
    %c0_i32_0 = arith.constant 0 : i32
    return %c0_i32 : i32
  }
  func.func @transform_1(%arg0: i32) -> (i32, i32) {
    %c0_i32 = arith.constant 0 : i32
    %c0_i32_0 = arith.constant 0 : i32
    return %c0_i32, %arg0 : i32, i32
  }
  func.func @transform_2(%arg0: i32) -> (i32, i32) {
    %c0_i32 = arith.constant 0 : i32
    %c0_i32_0 = arith.constant 0 : i32
    return %c0_i32, %arg0 : i32, i32
  }
  func.func @transform_3(%arg0: i32) -> (i32, i32) {
    %c0_i32 = arith.constant 0 : i32
    %c0_i32_0 = arith.constant 0 : i32
    %c0_i32_1 = arith.constant 0 : i32
    return %c0_i32, %c0_i32_0 : i32, i32
  }
  func.func @transform_4(%arg0: i32) -> (i32, i32) {
    %c0_i32 = arith.constant 0 : i32
    %c0_i32_0 = arith.constant 0 : i32
    %c0_i32_1 = arith.constant 0 : i32
    return %c0_i32, %c0_i32_0 : i32, i32
  }
}

</mosaic_0001>

<llo_original>
// kernel: tpu_custom_call.1
$region0: #{tpu_custom_call.1}
  #allocation0 [shape = 'u32[]', space=smem, size = 0x4, offset = 0x4, fixed_abs, tag = 'smem constant byte address 0x4 - core index']
  #allocation1 [shape = 'u32[144,128]{1,0:T(1,128)}', space=vmem, size = 0x12000, scoped, tag = 'internal scratch']
  #allocation2 [shape = 'f32[1]{0:T(128)S(6)}', space=smem, size = 0x200, scoped, tag = 'scoped memory for tpu_custom_call.1']
  %s0 = inlined_call_operand.<no memory space> [shape: f32[1], index: 0, kind: input, shape index: {}]
  %s1 = inlined_call_operand.hbm [shape: f32[32,1024], index: 1, kind: input, shape index: {}]
  %s2 = inlined_call_operand.hbm [shape: f32[1,1024], index: 2, kind: output, shape index: {0}]
  %s3 = inlined_call_operand.hbm [shape: f32[1,1], index: 3, kind: output, shape index: {1}]
  %s4 = inlined_call_operand.hbm [shape: f32[1,1], index: 4, kind: output, shape index: {2}]
  %5 = xla_tuple %s2, %s3, %s4
  %s6 = sld [smem:[#allocation0]]
  $region69: #{tpu_custom_call.1} parent=0
    _
  %s8 = ssub.s32 1, %s6
  %s9 = scalar_select 0, %s8, %s6
  %10 = sst [smem:[#allocation2]] %s0
  $region1: #{tpu_custom_call.1} parent=0
    #allocation3 [shape = 'u8[65536]{0}', space=vmem, size = 0x10000, scoped, tag = 'input window, operand 1']
    #allocation4 [shape = 's32[2]{0}', space=sflag, size = 0x8, scoped, tag = 'scoped memory for tpu_custom_call.1']
    #allocation5 [shape = 's32[2]{0}', space=sflag, size = 0x8, scoped, tag = 'scoped memory for tpu_custom_call.1']
    #allocation6 [shape = 'u8[2048]{0}', space=vmem, size = 0x800, scoped, tag = 'output window, operand 0']
    #allocation7 [shape = 'u8[512]{0}', space=vmem, size = 0x400, scoped, tag = 'output window, operand 1, single buffered']
    #allocation8 [shape = 's32[1]{0}', space=sflag, size = 0x4, scoped, tag = 'scoped memory for tpu_custom_call.1']
    #allocation9 [shape = 'u8[512]{0}', space=vmem, size = 0x400, scoped, tag = 'output window, operand 2, single buffered']
    %11 = vsyncpa [#allocation4], 0
    %s12 = scalar_lea.sflag [#allocation4], 1
    %13 = vsyncpa %s12, 0
    %14 = vsyncpa [#allocation5], 0
    %s15 = scalar_lea.sflag [#allocation5], 1
    %16 = vsyncpa %s15, 0
    %17 = vsyncpa [#allocation8], 0
    loop: start=0, step=1, limit=6
    $region2: #{tpu_custom_call.1} parent=1 // loop_pre_header
      _
    $region3: #{tpu_custom_call.1} parent=1 // loop_header
      %s19 = sphi 0, %s23
      %p20 = scmp.ge.s32.totalorder %s19, 6
      %s27 = sphi 0, %s27
      %s29 = sphi 0, %s27
      %s30 = sphi 0, %s29
      %s44 = sphi 0, %s30
      %s50 = sphi 0, %s52
      %s53 = sphi 0, %s50
      %s54 = sphi 0, %s53
      %s70 = sphi 0, %s54
      %s76 = sphi 0, %s78
      %s79 = sphi 0, %s76
      %s80 = sphi 0, %s79
      %s96 = sphi 0, %s80
      %s100 = sphi 0, %s100
      %s102 = sphi 0, %s100
      %s103 = sphi 0, %s102
      %s117 = sphi 0, %s103
      %s121 = sphi 0, %s121
      %s123 = sphi 0, %s121
      %s124 = sphi 0, %s123
      %s138 = sphi 0, %s124
    $region4: #{tpu_custom_call.1} parent=1 // loop_header_branch
      %22 = sbr.rel (%p20) target = $region8
    $region5: #{tpu_custom_call.1} parent=1 // loop_body
      %s24 = ssub.s32 %s19, 1
      %s25 = ssub.s32 %s19, 2
      %s26 = sadd.s32 %s19, 1
      %s28 = sadd.s32 %s27, 1
      %p31 = scmp.eq.s32.totalorder %s19, 3
      %p32 = scmp.ne.s32.totalorder %s27, %s29
      %p33 = scmp.eq.s32.totalorder %s19, 0
      %p34 = por %p32, %p33
      %p35 = scmp.ne.s32.totalorder %s27, %s29
      %p36 = scmp.eq.s32.totalorder %s24, 3
      %p37 = por %p35, %p36
      %p38 = scmp.ne.s32.totalorder %s29, %s30
      %p39 = scmp.eq.s32.totalorder %s24, 0
      %p40 = por %p38, %p39
      %p41 = scmp.ne.s32.totalorder %s29, %s30
      %p42 = scmp.eq.s32.totalorder %s25, 3
      %p43 = por %p41, %p42
      %p45 = scmp.ne.s32.totalorder %s30, %s44
      %p46 = scmp.eq.s32.totalorder %s25, 0
      %p47 = por %p45, %p46
      %s48 = ssub.s32 %s19, %s26
      %p49 = scmp.eq.s32.totalorder %s48, 0
      %s51 = sadd.s32 %s50, 1
      %s52 = scalar_select %p49, %s50, %s51
      %p55 = pneg %p49
      %p56 = scmp.eq.s32.totalorder %s19, 3
      %p57 = por %p55, %p56
      %p58 = scmp.ne.s32.totalorder %s50, %s53
      %p59 = scmp.eq.s32.totalorder %s19, 0
      %p60 = por %p58, %p59
      %p61 = scmp.ne.s32.totalorder %s50, %s53
      %p62 = scmp.eq.s32.totalorder %s24, 3
      %p63 = por %p61, %p62
      %p64 = scmp.ne.s32.totalorder %s53, %s54
      %p65 = scmp.eq.s32.totalorder %s24, 0
      %p66 = por %p64, %p65
      %p67 = scmp.ne.s32.totalorder %s53, %s54
      %p68 = scmp.eq.s32.totalorder %s25, 3
      %p69 = por %p67, %p68
      %p71 = scmp.ne.s32.totalorder %s54, %s70
      %p72 = scmp.eq.s32.totalorder %s25, 0
      %p73 = por %p71, %p72
      %s74 = ssub.s32 %s19, %s26
      %p75 = scmp.eq.s32.totalorder %s74, 0
      %s77 = sadd.s32 %s76, 1
      %s78 = scalar_select %p75, %s76, %s77
      %p81 = pneg %p75
      %p82 = scmp.eq.s32.totalorder %s19, 3
      %p83 = por %p81, %p82
      %p84 = scmp.ne.s32.totalorder %s76, %s79
      %p85 = scmp.eq.s32.totalorder %s19, 0
      %p86 = por %p84, %p85
      %p87 = scmp.ne.s32.totalorder %s76, %s79
      %p88 = scmp.eq.s32.totalorder %s24, 3
      %p89 = por %p87, %p88
      %p90 = scmp.ne.s32.totalorder %s79, %s80
      %p91 = scmp.eq.s32.totalorder %s24, 0
      %p92 = por %p90, %p91
      %p93 = scmp.ne.s32.totalorder %s79, %s80
      %p94 = scmp.eq.s32.totalorder %s25, 3
      %p95 = por %p93, %p94
      %p97 = scmp.ne.s32.totalorder %s80, %s96
      %p98 = scmp.eq.s32.totalorder %s25, 0
      %p99 = por %p97, %p98
      %s101 = sadd.s32 %s100, 1
      %p104 = scmp.eq.s32.totalorder %s19, 3
      %p105 = scmp.ne.s32.totalorder %s100, %s102
      %p106 = scmp.eq.s32.totalorder %s19, 0
      %p107 = por %p105, %p106
      %p108 = scmp.ne.s32.totalorder %s100, %s102
      %p109 = scmp.eq.s32.totalorder %s24, 3
      %p110 = por %p108, %p109
      %p111 = scmp.ne.s32.totalorder %s102, %s103
      %p112 = scmp.eq.s32.totalorder %s24, 0
      %p113 = por %p111, %p112
      %p114 = scmp.ne.s32.totalorder %s102, %s103
      %p115 = scmp.eq.s32.totalorder %s25, 3
      %p116 = por %p114, %p115
      %p118 = scmp.ne.s32.totalorder %s103, %s117
      %p119 = scmp.eq.s32.totalorder %s25, 0
      %p120 = por %p118, %p119
      %s122 = sadd.s32 %s121, 1
      %p125 = scmp.eq.s32.totalorder %s19, 3
      %p126 = scmp.ne.s32.totalorder %s121, %s123
      %p127 = scmp.eq.s32.totalorder %s19, 0
      %p128 = por %p126, %p127
      %p129 = scmp.ne.s32.totalorder %s121, %s123
      %p130 = scmp.eq.s32.totalorder %s24, 3
      %p131 = por %p129, %p130
      %p132 = scmp.ne.s32.totalorder %s123, %s124
      %p133 = scmp.eq.s32.totalorder %s24, 0
      %p134 = por %p132, %p133
      %p135 = scmp.ne.s32.totalorder %s123, %s124
      %p136 = scmp.eq.s32.totalorder %s25, 3
      %p137 = por %p135, %p136
      %p139 = scmp.ne.s32.totalorder %s124, %s138
      %p140 = scmp.eq.s32.totalorder %s25, 0
      %p141 = por %p139, %p140
      %p142 = scmp.le.s32.totalorder 1, %s19
      %p143 = scmp.lt.s32.totalorder %s19, 5
      %p144 = pnand %p142, %p143
      %p145 = pneg %p144
      // Predicated region
      $region9: #{tpu_custom_call.1} parent=5 // pred_check
        _
      $region10: #{tpu_custom_call.1} parent=5 // pred_check_branch
        %147 = sbr.rel (%p144) target = $region12
      $region11: #{tpu_custom_call.1} parent=5 // pred_region
        %s148 = ssub.s32 %s19, 1
        // Predicated region
        $region13: #{tpu_custom_call.1} parent=11 // pred_check
          %p149 = pneg %p40
        $region14: #{tpu_custom_call.1} parent=11 // pred_check_branch
          %151 = sbr.rel (%p149) target = $region16
        $region15: #{tpu_custom_call.1} parent=11 // pred_region
          _
        $region16: #{tpu_custom_call.1} parent=11 // pred_fallthru
          _
      $region12: #{tpu_custom_call.1} parent=5 // pred_fallthru
        _
      %p152 = scmp.lt.s32.totalorder %s19, 4
      // Predicated region
      $region17: #{tpu_custom_call.1} parent=5 // pred_check
        %p153 = pneg %p152
      $region18: #{tpu_custom_call.1} parent=5 // pred_check_branch
        %155 = sbr.rel (%p153) target = $region20
      $region19: #{tpu_custom_call.1} parent=5 // pred_region
        // Predicated region
        $region21: #{tpu_custom_call.1} parent=19 // pred_check
          %p156 = pneg %p60
        $region22: #{tpu_custom_call.1} parent=19 // pred_check_branch
          %158 = sbr.rel (%p156) target = $region24
        $region23: #{tpu_custom_call.1} parent=19 // pred_region
          %s159 = sand.u32 %s50, 1
          %s160 = scalar_lea.sflag [#allocation4], %s159
          %s161 = sand.u32 %s50, 1
          %s162 = smul.addr %s161, 64
          %s163 = scalar_lea.vmem [#allocation3], %s162
          %s164 = smul.u32 2, %s19
          %s166 = ssub.s32 1024, 1024
          %167 = vsyncadd %s160, %s166
          %s168 = smul.addr %s164, 128
          %s169 = scalar_lea.hbm %s1, %s168
          %s170 = sshll.u32 %s163, 4
          %s171 = int_to_ptr.vmem [resolvable:$true] %s170
          %176 = dma.hbm_to_vmem [thread:$0]  %s169, 1024, %s171, %s160, 1024, 256, 16
        $region24: #{tpu_custom_call.1} parent=19 // pred_fallthru
          _
      $region20: #{tpu_custom_call.1} parent=5 // pred_fallthru
        _
      %p177 = scmp.le.s32.totalorder 1, %s19
      %p178 = scmp.lt.s32.totalorder %s19, 5
      %p179 = pnand %p177, %p178
      %p180 = pneg %p179
      // Predicated region
      $region25: #{tpu_custom_call.1} parent=5 // pred_check
        _
      $region26: #{tpu_custom_call.1} parent=5 // pred_check_branch
        %182 = sbr.rel (%p179) target = $region28
      $region27: #{tpu_custom_call.1} parent=5 // pred_region
        %s183 = ssub.s32 %s19, 1
        %s184 = sand.u32 %s53, 1
        %s185 = scalar_lea.sflag [#allocation4], %s184
        %s186 = sand.u32 %s53, 1
        %s187 = smul.addr %s186, 64
        %s188 = scalar_lea.vmem [#allocation3], %s187
        // Predicated region
        $region29: #{tpu_custom_call.1} parent=27 // pred_check
          %p189 = pneg %p66
        $region30: #{tpu_custom_call.1} parent=27 // pred_check_branch
          %191 = sbr.rel (%p189) target = $region32
        $region31: #{tpu_custom_call.1} parent=27 // pred_region
          %192 = dma.done %s185, 1024
        $region32: #{tpu_custom_call.1} parent=27 // pred_fallthru
          _
        %p193 = pneg %p40
        %p194 = pneg %p37
        %s195 = sand.u32 %s53, 1
        %s196 = scalar_lea.sflag [#allocation4], %s195
        %s197 = sand.u32 %s53, 1
        %s198 = smul.addr %s197, 64
        %s199 = scalar_lea.vmem [#allocation3], %s198
        %p200 = pneg %p66
        %p201 = pneg %p63
        %p202 = pneg %p92
        %p203 = pneg %p89
        %s204 = sand.u32 %s79, 1
        %s205 = scalar_lea.sflag [#allocation5], %s204
        %s206 = sand.u32 %s79, 1
        %s207 = smul.addr %s206, 2
        %s208 = scalar_lea.vmem [#allocation6], %s207
        %p209 = pneg %p113
        %p210 = pneg %p110
        %p211 = pneg %p134
        %p212 = pneg %p131
        %s213 = smul.u32 2, %s24
        %s214 = smul.u32 2, %s24
        %v215 = vld [vmem:[%s188] sm:$0xff]
        %v216 = vld [vmem:[%s188 + $0x8] sm:$0xff]
        %v217 = vld [vmem:[%s188 + $0x10] sm:$0xff]
        %v218 = vld [vmem:[%s188 + $0x18] sm:$0xff]
        %v219 = vld [vmem:[%s188 + $0x20] sm:$0xff]
        %v220 = vld [vmem:[%s188 + $0x28] sm:$0xff]
        %v221 = vld [vmem:[%s188 + $0x30] sm:$0xff]
        %v222 = vld [vmem:[%s188 + $0x38] sm:$0xff]
        %v223 = vmul.f32 %v215, %v215
        %v224 = vmul.f32 %v216, %v216
        %v225 = vmul.f32 %v217, %v217
        %v226 = vmul.f32 %v218, %v218
        %v227 = vmul.f32 %v219, %v219
        %v228 = vmul.f32 %v220, %v220
        %v229 = vmul.f32 %v221, %v221
        %v230 = vmul.f32 %v222, %v222
        %v231 = vadd.f32 %v223, %v225
        %v232 = vadd.f32 %v231, %v227
        %v233 = vadd.f32 %v232, %v229
        %v234 = vrot.slane %v233, 4
        %v235 = vadd.f32 %v233, %v234
        %v236 = vrot.slane %v235, 2
        %v237 = vadd.f32 %v235, %v236
        %v238 = vrot.slane %v237, 1
        %v239 = vadd.f32 %v237, %v238
        %v240 = vadd.f32 %v224, %v226
        %v241 = vadd.f32 %v240, %v228
        %v242 = vadd.f32 %v241, %v230
        %v243 = vrot.slane %v242, 4
        %v244 = vadd.f32 %v242, %v243
        %v245 = vrot.slane %v244, 2
        %v246 = vadd.f32 %v244, %v245
        %v247 = vrot.slane %v246, 1
        %v248 = vadd.f32 %v246, %v247
        %s249 = sld [smem:[#allocation2]]
        %v250 = vstv %s249
        %v251 = vmul.f32 %v239, %v250
        %v252 = vmul.f32 %v248, %v250
        %v255 = vcombine.low %v251, %v252
        %v257 = vunpack.c.l.s4 1966171168
        %v258 = vunpack.c.0.s8 %v257
        %v259 = vlaneseq
        %v260 = vshrl.u32 %v259, 7
        %v261 = vsub.s32 %v258, %v260
        %v262 = vrot.slane %v255, %v261
        %v264 = vunpack.c.l.s4 1966171168
        %v265 = vunpack.c.0.s8 %v264
        %v266 = vlaneseq
        %v267 = vshrl.u32 %v266, 7
        %v268 = vsub.s32 %v265, %v267
        %v269 = vrot.slane %v262, %v268
        %v271 = vlaneseq
        %vm272 = vcmp.ge.s32.totalorder %v271, 0
        %vm273 = vcmp.lt.s32.totalorder %v271, 256
        %vm274 = vmand %vm272, %vm273
        %275 = vst.msk [vmem:[%s208] sm:$0x3] %vm274, %v269
        %v276 = vmin.f32 %v251, %v252
        %277 = vmin.xlane.f32.xlu0 %v276
        %v278 = vpop.xlane.xlu0 %277
        %s279 = vtos %v278
        %v280 = vstv %s279
        %v281 = vmax.f32 %v251, %v252
        %282 = vmax.xlane.f32.xlu0 %v281
        %v283 = vpop.xlane.xlu0 %282
        %s284 = vtos %v283
        %v285 = vstv %s284
        %p286 = scmp.eq.s32.totalorder %s24, 0
        // Predicated region
        $region33: #{tpu_custom_call.1} parent=27 // pred_check
          %p287 = pneg %p286
        $region34: #{tpu_custom_call.1} parent=27 // pred_check_branch
          %289 = sbr.rel (%p287) target = $region36
        $region35: #{tpu_custom_call.1} parent=27 // pred_region
          %vm290 = vcmask 0
          %291 = vst.msk [vmem:[#allocation7] sm:$0x1] %vm290, %v280
          %292 = vst.msk [vmem:[#allocation9] sm:$0x1] %vm290, %v285
        $region36: #{tpu_custom_call.1} parent=27 // pred_fallthru
          _
        %p293 = scmp.gt.s32.totalorder %s24, 0
        // Predicated region
        $region37: #{tpu_custom_call.1} parent=27 // pred_check
          %p294 = pneg %p293
        $region38: #{tpu_custom_call.1} parent=27 // pred_check_branch
          %296 = sbr.rel (%p294) target = $region40
        $region39: #{tpu_custom_call.1} parent=27 // pred_region
          %v297 = vld [vmem:[#allocation7] sm:$0x1]
          %v298 = vmin.f32 %v297, %v280
          %vm299 = vcmask 0
          %300 = vst.msk [vmem:[#allocation7] sm:$0x1] %vm299, %v298
          %v301 = vld [vmem:[#allocation9] sm:$0x1]
          %v302 = vmax.f32 %v301, %v285
          %303 = vst.msk [vmem:[#allocation9] sm:$0x1] %vm299, %v302
        $region40: #{tpu_custom_call.1} parent=27 // pred_fallthru
          _
        %s304 = sand.u32 %s79, 1
        %s305 = scalar_lea.sflag [#allocation5], %s304
        %s306 = sand.u32 %s79, 1
        %s307 = smul.addr %s306, 2
        %s308 = scalar_lea.vmem [#allocation6], %s307
        // Predicated region
        $region41: #{tpu_custom_call.1} parent=27 // pred_check
          %p309 = pneg %p89
        $region42: #{tpu_custom_call.1} parent=27 // pred_check_branch
          %311 = sbr.rel (%p309) target = $region44
        $region43: #{tpu_custom_call.1} parent=27 // pred_region
          %s312 = smul.u32 2, %s24
          %s314 = ssub.s32 32, 32
          %315 = vsyncadd %s305, %s314
          %s316 = smul.addr %s312, 16
          %s317 = scalar_lea.hbm %s2, %s316
          %s319 = sshll.u32 %s308, 4
          %s320 = int_to_ptr.vmem [resolvable:$true] %s319
          %322 = dma.vmem_to_hbm [thread:$0]  %s320, 32, %s317, %s305
        $region44: #{tpu_custom_call.1} parent=27 // pred_fallthru
          _
        // Predicated region
        $region45: #{tpu_custom_call.1} parent=27 // pred_check
          %p323 = pneg %p110
        $region46: #{tpu_custom_call.1} parent=27 // pred_check_branch
          %325 = sbr.rel (%p323) target = $region48
        $region47: #{tpu_custom_call.1} parent=27 // pred_region
          %s327 = ssub.s32 16, 16
          %328 = vsyncadd [#allocation8], %s327
          %s330 = sshll.u32 [#allocation7], 4
          %s331 = int_to_ptr.vmem [resolvable:$true] %s330
          %333 = dma.vmem_to_hbm [thread:$0]  %s331, 16, %s3, [#allocation8]
        $region48: #{tpu_custom_call.1} parent=27 // pred_fallthru
          _
        // Predicated region
        $region49: #{tpu_custom_call.1} parent=27 // pred_check
          %p334 = pneg %p131
        $region50: #{tpu_custom_call.1} parent=27 // pred_check_branch
          %336 = sbr.rel (%p334) target = $region52
        $region51: #{tpu_custom_call.1} parent=27 // pred_region
          %s338 = ssub.s32 16, 16
          %339 = vsyncadd [#allocation8], %s338
          %s341 = sshll.u32 [#allocation9], 4
          %s342 = int_to_ptr.vmem [resolvable:$true] %s341
          %344 = dma.vmem_to_hbm [thread:$0]  %s342, 16, %s4, [#allocation8]
        $region52: #{tpu_custom_call.1} parent=27 // pred_fallthru
          _
        // Predicated region
        $region53: #{tpu_custom_call.1} parent=27 // pred_check
          %p345 = pneg %p110
        $region54: #{tpu_custom_call.1} parent=27 // pred_check_branch
          %347 = sbr.rel (%p345) target = $region56
        $region55: #{tpu_custom_call.1} parent=27 // pred_region
          %348 = dma.done [#allocation8], 16
        $region56: #{tpu_custom_call.1} parent=27 // pred_fallthru
          _
        // Predicated region
        $region57: #{tpu_custom_call.1} parent=27 // pred_check
          %p349 = pneg %p131
        $region58: #{tpu_custom_call.1} parent=27 // pred_check_branch
          %351 = sbr.rel (%p349) target = $region60
        $region59: #{tpu_custom_call.1} parent=27 // pred_region
          %352 = dma.done [#allocation8], 16
        $region60: #{tpu_custom_call.1} parent=27 // pred_fallthru
          _
      $region28: #{tpu_custom_call.1} parent=5 // pred_fallthru
        _
      %p353 = scmp.le.s32.totalorder 2, %s19
      // Predicated region
      $region61: #{tpu_custom_call.1} parent=5 // pred_check
        %p354 = pneg %p353
      $region62: #{tpu_custom_call.1} parent=5 // pred_check_branch
        %356 = sbr.rel (%p354) target = $region64
      $region63: #{tpu_custom_call.1} parent=5 // pred_region
        %s357 = ssub.s32 %s19, 2
        // Predicated region
        $region65: #{tpu_custom_call.1} parent=63 // pred_check
          %p358 = pneg %p95
        $region66: #{tpu_custom_call.1} parent=63 // pred_check_branch
          %360 = sbr.rel (%p358) target = $region68
        $region67: #{tpu_custom_call.1} parent=63 // pred_region
          %s361 = sand.u32 %s80, 1
          %s362 = scalar_lea.sflag [#allocation5], %s361
          %s363 = sand.u32 %s80, 1
          %s364 = smul.addr %s363, 2
          %s365 = scalar_lea.vmem [#allocation6], %s364
          %366 = dma.done %s362, 32
        $region68: #{tpu_custom_call.1} parent=63 // pred_fallthru
          _
      $region64: #{tpu_custom_call.1} parent=5 // pred_fallthru
        _
    $region6: #{tpu_custom_call.1} parent=1 // loop_footer
      %s23 = sadd.s32 1, %s19
    $region7: #{tpu_custom_call.1} parent=1 // loop_footer_branch
      %18 = sbr.rel target = $region3
    $region8: #{tpu_custom_call.1} parent=1 // loop_exit
      _
    %367 = vsyncpa [#allocation4], 1
    %s368 = scalar_lea.sflag [#allocation4], 1
    %369 = vsyncpa %s368, 1
    %370 = vsyncpa [#allocation5], 1
    %s371 = scalar_lea.sflag [#allocation5], 1
    %372 = vsyncpa %s371, 1
    %373 = vsyncpa [#allocation8], 1

</llo_original>
